<compile_context>
chip_gen: v5e
topology: v5e:2x2
jax: 0.10.0
libtpu: 0.0.40
codegen_flags: <defaults>
</compile_context>

<pallas_src>
import jax
import jax.numpy as jnp
import numpy as np
from jax.experimental import pallas as pl
from jax.experimental.pallas import tpu as pltpu


def _human_perception_kernel(person_ref, global_ref,
                             wv_ref, bv_ref, wo_ref, bo_ref,
                             lnw_ref, lnb_ref,
                             w1_ref, b1_ref, w2_ref, b2_ref,
                             out_ref):
    x = person_ref[...]            # (B, P, D)
    g = global_ref[...]            # (B, D)
    B, P, D = x.shape

    # --- CrossAttention with key length 1: attn_out = out_proj(v_proj(global)) ---
    o = jnp.dot(g, wv_ref[...], preferred_element_type=jnp.float32) + bv_ref[...]   # (B, D)
    o = jnp.dot(o, wo_ref[...], preferred_element_type=jnp.float32) + bo_ref[...]   # (B, D)

    # residual add (broadcast per batch row) + LayerNorm over feature dim
    y = x + o[:, None, :]                                                            # (B, P, D)
    mean = jnp.mean(y, axis=-1, keepdims=True)
    var = jnp.mean((y - mean) * (y - mean), axis=-1, keepdims=True)
    refined = (y - mean) * jax.lax.rsqrt(var + 1e-5) * lnw_ref[...] + lnb_ref[...]   # (B, P, D)

    # --- fused pose|shape MLP: Linear(D,2H) -> ReLU -> Linear(2H, 128 padded) ---
    refined2 = refined.reshape(B * P, D)                                             # (B*P, D)
    h = jnp.dot(refined2, w1_ref[...], preferred_element_type=jnp.float32) + b1_ref[...]
    h = jnp.maximum(h, 0.0)                                                          # (B*P, 2H)
    out = jnp.dot(h, w2_ref[...], preferred_element_type=jnp.float32) + b2_ref[...]  # (B*P, 128)
    out_ref[...] = out.astype(out_ref.dtype)


def human_perception_head(person, globalf, params, num_joints):
    B, P, D = person.shape
    J3 = num_joints * 3
    NPAD = params["w2cat"].shape[1]
    TWO_H = params["w1cat"].shape[1]
    g2 = globalf.reshape(B, D)

    weight_names = ("wv_t", "bv", "wo_t", "bo", "ln_w", "ln_b",
                    "w1cat", "b1cat", "w2cat", "b2cat")
    weight_args = [params[k] for k in weight_names]

    def full_spec(a):
        nd = a.ndim
        return pl.BlockSpec(a.shape, lambda i, nd=nd: (0,) * nd)

    in_specs = [pl.BlockSpec((B, P, D), lambda i: (0, 0, 0)),
                pl.BlockSpec((B, D), lambda i: (0, 0))] + \
               [full_spec(a) for a in weight_args]
    out_specs = pl.BlockSpec((B * P, NPAD), lambda i: (0, 0))

    flops = 2 * (2 * B * D * D + B * P * D * TWO_H + B * P * TWO_H * NPAD)
    bytes_accessed = 4 * (person.size + g2.size +
                          sum(int(a.size) for a in weight_args) + B * P * NPAD)

    packed = pl.pallas_call(
        _human_perception_kernel,
        out_shape=jax.ShapeDtypeStruct((B * P, NPAD), jnp.float32),
        grid_spec=pltpu.PrefetchScalarGridSpec(
            num_scalar_prefetch=0,
            grid=(1,),
            in_specs=in_specs,
            out_specs=out_specs,
        ),
        compiler_params=pltpu.CompilerParams(
            dimension_semantics=("arbitrary",)),
        cost_estimate=pl.CostEstimate(flops=flops,
                                      transcendentals=B * P,
                                      bytes_accessed=bytes_accessed),
    )(person, g2, *weight_args)

    out3 = packed.reshape(B, P, NPAD)
    pose = out3[..., :J3]
    shape = out3[..., J3:J3 + 10]
    return pose, shape


def make_params(key, feature_dim, hidden_dim, num_joints, npad=128):
    D, H, J3 = feature_dim, hidden_dim, num_joints * 3
    ks = jax.random.split(key, 12)
    s = 0.02

    def rnd(k, shape):
        return (s * jax.random.normal(k, shape)).astype(jnp.float32)

    # PyTorch-convention weights (out, in), then transpose for the kernel.
    wv = rnd(ks[0], (D, D));    bv = rnd(ks[1], (D,))
    wo = rnd(ks[2], (D, D));    bo = rnd(ks[3], (D,))
    wp1 = rnd(ks[4], (H, D));   bp1 = rnd(ks[5], (H,))
    wp2 = rnd(ks[6], (J3, H));  bp2 = rnd(ks[7], (J3,))
    ws1 = rnd(ks[8], (H, D));   bs1 = rnd(ks[9], (H,))
    ws2 = rnd(ks[10], (10, H)); bs2 = rnd(ks[11], (10,))
    ln_w = jnp.ones((D,), jnp.float32)
    ln_b = jnp.zeros((D,), jnp.float32)

    # Fused first layer: [Wp1 | Ws1]  -> (D, 2H)
    w1cat = jnp.concatenate([wp1.T, ws1.T], axis=1)
    b1cat = jnp.concatenate([bp1, bs1]).reshape(1, 2 * H)
    # Fused, zero-padded second layer: block-diagonal into 128 lanes.
    w2cat = jnp.zeros((2 * H, npad), jnp.float32)
    w2cat = w2cat.at[:H, :J3].set(wp2.T)
    w2cat = w2cat.at[H:, J3:J3 + 10].set(ws2.T)
    b2cat = jnp.zeros((1, npad), jnp.float32)
    b2cat = b2cat.at[0, :J3].set(bp2)
    b2cat = b2cat.at[0, J3:J3 + 10].set(bs2)

    kernel_params = {
        "wv_t": wv.T, "bv": bv.reshape(1, D),
        "wo_t": wo.T, "bo": bo.reshape(1, D),
        "ln_w": ln_w.reshape(1, D), "ln_b": ln_b.reshape(1, D),
        "w1cat": w1cat, "b1cat": b1cat,
        "w2cat": w2cat, "b2cat": b2cat,
    }
    ref_params = {
        "wv_t": wv.T, "bv": bv.reshape(1, D),
        "wo_t": wo.T, "bo": bo.reshape(1, D),
        "ln_w": ln_w.reshape(1, D), "ln_b": ln_b.reshape(1, D),
        "wp1_t": wp1.T, "bp1": bp1.reshape(1, H),
        "wp2_t": wp2.T, "bp2": bp2.reshape(1, J3),
        "ws1_t": ws1.T, "bs1": bs1.reshape(1, H),
        "ws2_t": ws2.T, "bs2": bs2.reshape(1, 10),
    }
    return kernel_params, ref_params


def reference(person, globalf, p):
    # Pure-JAX reference of the same (eval-mode) forward, using unfused weights.
    v = globalf @ p["wv_t"] + p["bv"]                       # (B, 1, D)
    attn = jnp.broadcast_to(v, person.shape)                # (B, P, D)
    attn = attn @ p["wo_t"] + p["bo"]
    y = attn + person
    mean = jnp.mean(y, axis=-1, keepdims=True)
    var = jnp.mean((y - mean) ** 2, axis=-1, keepdims=True)
    refined = (y - mean) / jnp.sqrt(var + 1e-5) * p["ln_w"] + p["ln_b"]
    h = jnp.maximum(refined @ p["wp1_t"] + p["bp1"], 0.0)
    pose = h @ p["wp2_t"] + p["bp2"]
    hs = jnp.maximum(refined @ p["ws1_t"] + p["bs1"], 0.0)
    shp = hs @ p["ws2_t"] + p["bs2"]
    return pose, shp


if __name__ == "__main__":
    # Small, module-consistent shapes (num_heads=8 -> head_dim=8; heads unused: key len 1).
    batch_size, num_people = 2, 4
    feature_dim, hidden_dim, num_joints = 64, 32, 5

    key = jax.random.PRNGKey(0)
    k1, k2, k3 = jax.random.split(key, 3)
    person_features = jax.random.normal(k1, (batch_size, num_people, feature_dim), jnp.float32)
    global_features = jax.random.normal(k2, (batch_size, 1, feature_dim), jnp.float32)
    kernel_params, ref_params = make_params(k3, feature_dim, hidden_dim, num_joints)

    pose_params, shape_params = human_perception_head(
        person_features, global_features, kernel_params, num_joints)
    jax.block_until_ready((pose_params, shape_params))

    ref_pose, ref_shape = reference(person_features, global_features, ref_params)
    np.testing.assert_allclose(np.asarray(pose_params), np.asarray(ref_pose), rtol=1e-4, atol=1e-5)
    np.testing.assert_allclose(np.asarray(shape_params), np.asarray(ref_shape), rtol=1e-4, atol=1e-5)

    assert pose_params.shape == (batch_size, num_people, num_joints * 3)
    assert shape_params.shape == (batch_size, num_people, 10)
    print("KERNEL_OK")
</pallas_src>

<mosaic_0001>
module attributes {stable_mosaic.version = 11 : i64} {
  func.func @_human_perception_kernel(%arg0: i32, %arg1: memref<2x4x64xf32, #tpu.memory_space<vmem>>, %arg2: memref<2x64xf32, #tpu.memory_space<vmem>>, %arg3: memref<64x64xf32, #tpu.memory_space<vmem>>, %arg4: memref<1x64xf32, #tpu.memory_space<vmem>>, %arg5: memref<64x64xf32, #tpu.memory_space<vmem>>, %arg6: memref<1x64xf32, #tpu.memory_space<vmem>>, %arg7: memref<1x64xf32, #tpu.memory_space<vmem>>, %arg8: memref<1x64xf32, #tpu.memory_space<vmem>>, %arg9: memref<64x64xf32, #tpu.memory_space<vmem>>, %arg10: memref<1x64xf32, #tpu.memory_space<vmem>>, %arg11: memref<64x128xf32, #tpu.memory_space<vmem>>, %arg12: memref<1x128xf32, #tpu.memory_space<vmem>>, %arg13: memref<8x128xf32, #tpu.memory_space<vmem>>) attributes {dimension_semantics = [#tpu.dimension_semantics<arbitrary>], iteration_bounds = array<i64: 1>, scalar_prefetch = 0 : i64, scratch_operands = 0 : i64, tpu.core_type = #tpu.core_type<tc>, window_params = [{pipeline_mode = #tpu.pipeline_mode<synchronous>, transform_indices = @transform_0, window_bounds = array<i64: 2, 4, 64>}, {pipeline_mode = #tpu.pipeline_mode<synchronous>, transform_indices = @transform_1, window_bounds = array<i64: 2, 64>}, {pipeline_mode = #tpu.pipeline_mode<synchronous>, transform_indices = @transform_2, window_bounds = array<i64: 64, 64>}, {pipeline_mode = #tpu.pipeline_mode<synchronous>, transform_indices = @transform_3, window_bounds = array<i64: 1, 64>}, {pipeline_mode = #tpu.pipeline_mode<synchronous>, transform_indices = @transform_4, window_bounds = array<i64: 64, 64>}, {pipeline_mode = #tpu.pipeline_mode<synchronous>, transform_indices = @transform_5, window_bounds = array<i64: 1, 64>}, {pipeline_mode = #tpu.pipeline_mode<synchronous>, transform_indices = @transform_6, window_bounds = array<i64: 1, 64>}, {pipeline_mode = #tpu.pipeline_mode<synchronous>, transform_indices = @transform_7, window_bounds = array<i64: 1, 64>}, {pipeline_mode = #tpu.pipeline_mode<synchronous>, transform_indices = @transform_8, window_bounds = array<i64: 64, 64>}, {pipeline_mode = #tpu.pipeline_mode<synchronous>, transform_indices = @transform_9, window_bounds = array<i64: 1, 64>}, {pipeline_mode = #tpu.pipeline_mode<synchronous>, transform_indices = @transform_10, window_bounds = array<i64: 64, 128>}, {pipeline_mode = #tpu.pipeline_mode<synchronous>, transform_indices = @transform_11, window_bounds = array<i64: 1, 128>}, {pipeline_mode = #tpu.pipeline_mode<synchronous>, transform_indices = @transform_12, window_bounds = array<i64: 8, 128>}]} {
    %c0 = arith.constant 0 : index
    %c0_0 = arith.constant 0 : index
    %c0_1 = arith.constant 0 : index
    %0 = vector.load %arg1[%c0, %c0_0, %c0_1] : memref<2x4x64xf32, #tpu.memory_space<vmem>>, vector<2x4x64xf32>
    %c0_2 = arith.constant 0 : index
    %c0_3 = arith.constant 0 : index
    %1 = vector.load %arg2[%c0_2, %c0_3] : memref<2x64xf32, #tpu.memory_space<vmem>>, vector<2x64xf32>
    %c0_4 = arith.constant 0 : index
    %c0_5 = arith.constant 0 : index
    %2 = vector.load %arg3[%c0_4, %c0_5] : memref<64x64xf32, #tpu.memory_space<vmem>>, vector<64x64xf32>
    %cst = arith.constant dense<0.000000e+00> : vector<2x64xf32>
    %3 = tpu.matmul %1, %2, %cst {dimension_numbers = #tpu.dot_dimension_numbers<[1], [0], [0], [1], [0, 0, 1, 1], [], []>} : vector<2x64xf32>, vector<64x64xf32>, vector<2x64xf32> -> vector<2x64xf32>
    %c0_6 = arith.constant 0 : index
    %c0_7 = arith.constant 0 : index
    %4 = vector.load %arg4[%c0_6, %c0_7] : memref<1x64xf32, #tpu.memory_space<vmem>>, vector<1x64xf32>
    %5 = vector.broadcast %4 : vector<1x64xf32> to vector<2x64xf32>
    %6 = arith.addf %3, %5 : vector<2x64xf32>
    %c0_8 = arith.constant 0 : index
    %c0_9 = arith.constant 0 : index
    %7 = vector.load %arg5[%c0_8, %c0_9] : memref<64x64xf32, #tpu.memory_space<vmem>>, vector<64x64xf32>
    %cst_10 = arith.constant dense<0.000000e+00> : vector<2x64xf32>
    %8 = tpu.matmul %6, %7, %cst_10 {dimension_numbers = #tpu.dot_dimension_numbers<[1], [0], [0], [1], [0, 0, 1, 1], [], []>} : vector<2x64xf32>, vector<64x64xf32>, vector<2x64xf32> -> vector<2x64xf32>
    %c0_11 = arith.constant 0 : index
    %c0_12 = arith.constant 0 : index
    %9 = vector.load %arg6[%c0_11, %c0_12] : memref<1x64xf32, #tpu.memory_space<vmem>>, vector<1x64xf32>
    %10 = vector.broadcast %9 : vector<1x64xf32> to vector<2x64xf32>
    %11 = arith.addf %8, %10 : vector<2x64xf32>
    %12 = vector.shape_cast %11 : vector<2x64xf32> to vector<2x1x64xf32>
    %13 = vector.broadcast %12 : vector<2x1x64xf32> to vector<2x4x64xf32>
    %14 = arith.addf %0, %13 : vector<2x4x64xf32>
    %cst_13 = arith.constant dense<0.000000e+00> : vector<2x4xf32>
    %15 = vector.multi_reduction <add>, %14, %cst_13 [2] : vector<2x4x64xf32> to vector<2x4xf32>
    %16 = vector.shape_cast %15 : vector<2x4xf32> to vector<2x4x1xf32>
    %cst_14 = arith.constant 6.400000e+01 : f32
    %17 = vector.broadcast %cst_14 : f32 to vector<2x4x1xf32>
    %18 = arith.divf %16, %17 : vector<2x4x1xf32>
    %19 = vector.broadcast %18 : vector<2x4x1xf32> to vector<2x4x64xf32>
    %20 = arith.subf %14, %19 : vector<2x4x64xf32>
    %21 = vector.broadcast %18 : vector<2x4x1xf32> to vector<2x4x64xf32>
    %22 = arith.subf %14, %21 : vector<2x4x64xf32>
    %23 = arith.mulf %20, %22 : vector<2x4x64xf32>
    %cst_15 = arith.constant dense<0.000000e+00> : vector<2x4xf32>
    %24 = vector.multi_reduction <add>, %23, %cst_15 [2] : vector<2x4x64xf32> to vector<2x4xf32>
    %25 = vector.shape_cast %24 : vector<2x4xf32> to vector<2x4x1xf32>
    %cst_16 = arith.constant 6.400000e+01 : f32
    %26 = vector.broadcast %cst_16 : f32 to vector<2x4x1xf32>
    %27 = arith.divf %25, %26 : vector<2x4x1xf32>
    %28 = vector.broadcast %18 : vector<2x4x1xf32> to vector<2x4x64xf32>
    %29 = arith.subf %14, %28 : vector<2x4x64xf32>
    %cst_17 = arith.constant 9.99999974E-6 : f32
    %30 = vector.broadcast %cst_17 : f32 to vector<2x4x1xf32>
    %31 = arith.addf %27, %30 : vector<2x4x1xf32>
    %32 = math.rsqrt %31 : vector<2x4x1xf32>
    %33 = vector.broadcast %32 : vector<2x4x1xf32> to vector<2x4x64xf32>
    %34 = arith.mulf %29, %33 : vector<2x4x64xf32>
    %c0_18 = arith.constant 0 : index
    %c0_19 = arith.constant 0 : index
    %35 = vector.load %arg7[%c0_18, %c0_19] : memref<1x64xf32, #tpu.memory_space<vmem>>, vector<1x64xf32>
    %36 = vector.shape_cast %35 : vector<1x64xf32> to vector<1x1x64xf32>
    %37 = vector.broadcast %36 : vector<1x1x64xf32> to vector<2x4x64xf32>
    %38 = arith.mulf %34, %37 : vector<2x4x64xf32>
    %c0_20 = arith.constant 0 : index
    %c0_21 = arith.constant 0 : index
    %39 = vector.load %arg8[%c0_20, %c0_21] : memref<1x64xf32, #tpu.memory_space<vmem>>, vector<1x64xf32>
    %40 = vector.shape_cast %39 : vector<1x64xf32> to vector<1x1x64xf32>
    %41 = vector.broadcast %40 : vector<1x1x64xf32> to vector<2x4x64xf32>
    %42 = arith.addf %38, %41 : vector<2x4x64xf32>
    %43 = vector.shape_cast %42 : vector<2x4x64xf32> to vector<8x64xf32>
    %c0_22 = arith.constant 0 : index
    %c0_23 = arith.constant 0 : index
    %44 = vector.load %arg9[%c0_22, %c0_23] : memref<64x64xf32, #tpu.memory_space<vmem>>, vector<64x64xf32>
    %cst_24 = arith.constant dense<0.000000e+00> : vector<8x64xf32>
    %45 = tpu.matmul %43, %44, %cst_24 {dimension_numbers = #tpu.dot_dimension_numbers<[1], [0], [0], [1], [0, 0, 1, 1], [], []>} : vector<8x64xf32>, vector<64x64xf32>, vector<8x64xf32> -> vector<8x64xf32>
    %c0_25 = arith.constant 0 : index
    %c0_26 = arith.constant 0 : index
    %46 = vector.load %arg10[%c0_25, %c0_26] : memref<1x64xf32, #tpu.memory_space<vmem>>, vector<1x64xf32>
    %47 = vector.broadcast %46 : vector<1x64xf32> to vector<8x64xf32>
    %48 = arith.addf %45, %47 : vector<8x64xf32>
    %cst_27 = arith.constant 0.000000e+00 : f32
    %49 = vector.broadcast %cst_27 : f32 to vector<8x64xf32>
    %50 = arith.maximumf %48, %49 : vector<8x64xf32>
    %c0_28 = arith.constant 0 : index
    %c0_29 = arith.constant 0 : index
    %51 = vector.load %arg11[%c0_28, %c0_29] : memref<64x128xf32, #tpu.memory_space<vmem>>, vector<64x128xf32>
    %cst_30 = arith.constant dense<0.000000e+00> : vector<8x128xf32>
    %52 = tpu.matmul %50, %51, %cst_30 {dimension_numbers = #tpu.dot_dimension_numbers<[1], [0], [0], [1], [0, 0, 1, 1], [], []>} : vector<8x64xf32>, vector<64x128xf32>, vector<8x128xf32> -> vector<8x128xf32>
    %c0_31 = arith.constant 0 : index
    %c0_32 = arith.constant 0 : index
    %53 = vector.load %arg12[%c0_31, %c0_32] : memref<1x128xf32, #tpu.memory_space<vmem>>, vector<1x128xf32>
    %54 = vector.broadcast %53 : vector<1x128xf32> to vector<8x128xf32>
    %55 = arith.addf %52, %54 : vector<8x128xf32>
    %c0_33 = arith.constant 0 : index
    %c0_34 = arith.constant 0 : index
    %56 = vector.load %arg13[%c0_33, %c0_34] : memref<8x128xf32, #tpu.memory_space<vmem>>, vector<8x128xf32>
    tpu.vector_store %arg13[%c0_33, %c0_34], %55 {strides = array<i32>} : memref<8x128xf32, #tpu.memory_space<vmem>>, vector<8x128xf32>,
    return
  }
  func.func @transform_0(%arg0: i32) -> (i32, i32, i32) {
    %c0_i32 = arith.constant 0 : i32
    %c0_i32_0 = arith.constant 0 : i32
    %c0_i32_1 = arith.constant 0 : i32
    %c0_i32_2 = arith.constant 0 : i32
    return %c0_i32, %c0_i32_0, %c0_i32_1 : i32, i32, i32
  }
  func.func @transform_1(%arg0: i32) -> (i32, i32) {
    %c0_i32 = arith.constant 0 : i32
    %c0_i32_0 = arith.constant 0 : i32
    %c0_i32_1 = arith.constant 0 : i32
    return %c0_i32, %c0_i32_0 : i32, i32
  }
  func.func @transform_2(%arg0: i32) -> (i32, i32) {
    %c0_i32 = arith.constant 0 : i32
    %c0_i32_0 = arith.constant 0 : i32
    %c0_i32_1 = arith.constant 0 : i32
    return %c0_i32, %c0_i32_0 : i32, i32
  }
  func.func @transform_3(%arg0: i32) -> (i32, i32) {
    %c0_i32 = arith.constant 0 : i32
    %c0_i32_0 = arith.constant 0 : i32
    %c0_i32_1 = arith.constant 0 : i32
    return %c0_i32, %c0_i32_0 : i32, i32
  }
  func.func @transform_4(%arg0: i32) -> (i32, i32) {
    %c0_i32 = arith.constant 0 : i32
    %c0_i32_0 = arith.constant 0 : i32
    %c0_i32_1 = arith.constant 0 : i32
    return %c0_i32, %c0_i32_0 : i32, i32
  }
  func.func @transform_5(%arg0: i32) -> (i32, i32) {
    %c0_i32 = arith.constant 0 : i32
    %c0_i32_0 = arith.constant 0 : i32
    %c0_i32_1 = arith.constant 0 : i32
    return %c0_i32, %c0_i32_0 : i32, i32
  }
  func.func @transform_6(%arg0: i32) -> (i32, i32) {
    %c0_i32 = arith.constant 0 : i32
    %c0_i32_0 = arith.constant 0 : i32
    %c0_i32_1 = arith.constant 0 : i32
    return %c0_i32, %c0_i32_0 : i32, i32
  }
  func.func @transform_7(%arg0: i32) -> (i32, i32) {
    %c0_i32 = arith.constant 0 : i32
    %c0_i32_0 = arith.constant 0 : i32
    %c0_i32_1 = arith.constant 0 : i32
    return %c0_i32, %c0_i32_0 : i32, i32
  }
  func.func @transform_8(%arg0: i32) -> (i32, i32) {
    %c0_i32 = arith.constant 0 : i32
    %c0_i32_0 = arith.constant 0 : i32
    %c0_i32_1 = arith.constant 0 : i32
    return %c0_i32, %c0_i32_0 : i32, i32
  }
  func.func @transform_9(%arg0: i32) -> (i32, i32) {
    %c0_i32 = arith.constant 0 : i32
    %c0_i32_0 = arith.constant 0 : i32
    %c0_i32_1 = arith.constant 0 : i32
    return %c0_i32, %c0_i32_0 : i32, i32
  }
  func.func @transform_10(%arg0: i32) -> (i32, i32) {
    %c0_i32 = arith.constant 0 : i32
    %c0_i32_0 = arith.constant 0 : i32
    %c0_i32_1 = arith.constant 0 : i32
    return %c0_i32, %c0_i32_0 : i32, i32
  }
  func.func @transform_11(%arg0: i32) -> (i32, i32) {
    %c0_i32 = arith.constant 0 : i32
    %c0_i32_0 = arith.constant 0 : i32
    %c0_i32_1 = arith.constant 0 : i32
    return %c0_i32, %c0_i32_0 : i32, i32
  }
  func.func @transform_12(%arg0: i32) -> (i32, i32) {
    %c0_i32 = arith.constant 0 : i32
    %c0_i32_0 = arith.constant 0 : i32
    %c0_i32_1 = arith.constant 0 : i32
    return %c0_i32, %c0_i32_0 : i32, i32
  }
}

</mosaic_0001>

<llo_original>
// kernel: tpu_custom_call.1
$region0: #{tpu_custom_call.1}
  #allocation0 [shape = 'u32[]', space=smem, size = 0x4, offset = 0x4, fixed_abs, tag = 'smem constant byte address 0x4 - core index']
  #allocation1 [shape = 'u32[72,128]{1,0:T(1,128)}', space=vmem, size = 0x9000, scoped, tag = 'internal scratch']
  %s0 = inlined_call_operand.hbm [shape: f32[2,4,64], index: 0, kind: input, shape index: {}]
  %s1 = inlined_call_operand.hbm [shape: f32[2,64], index: 1, kind: input, shape index: {}]
  %s2 = inlined_call_operand.hbm [shape: f32[64,64], index: 2, kind: input, shape index: {}]
  %s3 = inlined_call_operand.vmem [shape: f32[1,64], index: 3, kind: input, shape index: {}]
  %s4 = inlined_call_operand.hbm [shape: f32[64,64], index: 4, kind: input, shape index: {}]
  %s5 = inlined_call_operand.vmem [shape: f32[1,64], index: 5, kind: input, shape index: {}]
  %s6 = inlined_call_operand.vmem [shape: f32[1,64], index: 6, kind: input, shape index: {}]
  %s7 = inlined_call_operand.vmem [shape: f32[1,64], index: 7, kind: input, shape index: {}]
  %s8 = inlined_call_operand.hbm [shape: f32[64,64], index: 8, kind: input, shape index: {}]
  %s9 = inlined_call_operand.vmem [shape: f32[1,64], index: 9, kind: input, shape index: {}]
  %s10 = inlined_call_operand.hbm [shape: f32[64,128], index: 10, kind: input, shape index: {}]
  %s11 = inlined_call_operand.vmem [shape: f32[1,128], index: 11, kind: input, shape index: {}]
  %s12 = inlined_call_operand.hbm [shape: f32[8,128], index: 12, kind: output, shape index: {}]
  %s13 = sld [smem:[#allocation0]]
  $region82: #{tpu_custom_call.1} parent=0
    _
  %s15 = ssub.s32 1, %s13
  %s16 = scalar_select 0, %s15, %s13
  $region1: #{tpu_custom_call.1} parent=0
    #allocation2 [shape = 'u8[4096]{0}', space=vmem, size = 0x1000, scoped, tag = 'input window, operand 0, single buffered']
    #allocation3 [shape = 's32[1]{0}', space=sflag, size = 0x4, scoped, tag = 'scoped memory for tpu_custom_call.1']
    #allocation4 [shape = 's32[1]{0}', space=sflag, size = 0x4, scoped, tag = 'scoped memory for tpu_custom_call.1']
    #allocation5 [shape = 'u8[1024]{0}', space=vmem, size = 0x400, scoped, tag = 'input window, operand 1, single buffered']
    #allocation6 [shape = 's32[1]{0}', space=sflag, size = 0x4, scoped, tag = 'scoped memory for tpu_custom_call.1']
    #allocation7 [shape = 'u8[32768]{0}', space=vmem, size = 0x8000, scoped, tag = 'input window, operand 2, single buffered']
    #allocation8 [shape = 'u8[32768]{0}', space=vmem, size = 0x8000, scoped, tag = 'input window, operand 4, single buffered']
    #allocation9 [shape = 's32[1]{0}', space=sflag, size = 0x4, scoped, tag = 'scoped memory for tpu_custom_call.1']
    #allocation10 [shape = 'u8[32768]{0}', space=vmem, size = 0x8000, scoped, tag = 'input window, operand 8, single buffered']
    #allocation11 [shape = 'u8[32768]{0}', space=vmem, size = 0x8000, scoped, tag = 'input window, operand 10, single buffered']
    #allocation12 [shape = 's32[1]{0}', space=sflag, size = 0x4, scoped, tag = 'scoped memory for tpu_custom_call.1']
    #allocation13 [shape = 'u8[4096]{0}', space=vmem, size = 0x1000, scoped, tag = 'output window, operand 0, single buffered']
    %17 = vsyncpa [#allocation3], 0
    %18 = vsyncpa [#allocation6], 0
    %19 = vsyncpa [#allocation9], 0
    %20 = vsyncpa [#allocation12], 0
    %21 = vsyncpa [#allocation4], 0
    // Predicated region
    $region2: #{tpu_custom_call.1} parent=1 // pred_check
      _
    $region3: #{tpu_custom_call.1} parent=1 // pred_check_branch
      %23 = sbr.rel (0) target = $region5
    $region4: #{tpu_custom_call.1} parent=1 // pred_region
      %25 = vsyncadd [#allocation3], 0
      %s26 = sshll.u32 %s0, 4
      %s27 = int_to_ptr.hbm [resolvable:$true] %s26
      %s28 = sshll.u32 [#allocation2], 4
      %s29 = int_to_ptr.vmem [resolvable:$true] %s28
      %34 = dma.hbm_to_vmem [thread:$0]  %s27, 128, %s29, [#allocation3], 64, 64, 4
    $region5: #{tpu_custom_call.1} parent=1 // pred_fallthru
      _
    // Predicated region
    $region6: #{tpu_custom_call.1} parent=1 // pred_check
      _
    $region7: #{tpu_custom_call.1} parent=1 // pred_check_branch
      %36 = sbr.rel (0) target = $region9
    $region8: #{tpu_custom_call.1} parent=1 // pred_region
      %38 = vsyncadd [#allocation6], 0
      %s40 = sshll.u32 %s1, 4
      %s41 = int_to_ptr.hbm [resolvable:$true] %s40
      %s42 = sshll.u32 [#allocation5], 4
      %s43 = int_to_ptr.vmem [resolvable:$true] %s42
      %45 = dma.hbm_to_vmem [thread:$0]  %s41, 32, %s43, [#allocation6]
    $region9: #{tpu_custom_call.1} parent=1 // pred_fallthru
      _
    // Predicated region
    $region10: #{tpu_custom_call.1} parent=1 // pred_check
      _
    $region11: #{tpu_custom_call.1} parent=1 // pred_check_branch
      %47 = sbr.rel (0) target = $region13
    $region12: #{tpu_custom_call.1} parent=1 // pred_region
      %49 = vsyncadd [#allocation6], 0
      %s50 = sshll.u32 %s2, 4
      %s51 = int_to_ptr.hbm [resolvable:$true] %s50
      %s52 = sshll.u32 [#allocation7], 4
      %s53 = int_to_ptr.vmem [resolvable:$true] %s52
      %58 = dma.hbm_to_vmem [thread:$0]  %s51, 1024, %s53, [#allocation6], 128, 128, 8
    $region13: #{tpu_custom_call.1} parent=1 // pred_fallthru
      _
    // Predicated region
    $region14: #{tpu_custom_call.1} parent=1 // pred_check
      _
    $region15: #{tpu_custom_call.1} parent=1 // pred_check_branch
      %60 = sbr.rel (0) target = $region17
    $region16: #{tpu_custom_call.1} parent=1 // pred_region
      _
    $region17: #{tpu_custom_call.1} parent=1 // pred_fallthru
      _
    // Predicated region
    $region18: #{tpu_custom_call.1} parent=1 // pred_check
      _
    $region19: #{tpu_custom_call.1} parent=1 // pred_check_branch
      %62 = sbr.rel (0) target = $region21
    $region20: #{tpu_custom_call.1} parent=1 // pred_region
      %64 = vsyncadd [#allocation9], 0
      %s65 = sshll.u32 %s4, 4
      %s66 = int_to_ptr.hbm [resolvable:$true] %s65
      %s67 = sshll.u32 [#allocation8], 4
      %s68 = int_to_ptr.vmem [resolvable:$true] %s67
      %73 = dma.hbm_to_vmem [thread:$0]  %s66, 1024, %s68, [#allocation9], 128, 128, 8
    $region21: #{tpu_custom_call.1} parent=1 // pred_fallthru
      _
    // Predicated region
    $region22: #{tpu_custom_call.1} parent=1 // pred_check
      _
    $region23: #{tpu_custom_call.1} parent=1 // pred_check_branch
      %75 = sbr.rel (0) target = $region25
    $region24: #{tpu_custom_call.1} parent=1 // pred_region
      _
    $region25: #{tpu_custom_call.1} parent=1 // pred_fallthru
      _
    // Predicated region
    $region26: #{tpu_custom_call.1} parent=1 // pred_check
      _
    $region27: #{tpu_custom_call.1} parent=1 // pred_check_branch
      %77 = sbr.rel (0) target = $region29
    $region28: #{tpu_custom_call.1} parent=1 // pred_region
      _
    $region29: #{tpu_custom_call.1} parent=1 // pred_fallthru
      _
    // Predicated region
    $region30: #{tpu_custom_call.1} parent=1 // pred_check
      _
    $region31: #{tpu_custom_call.1} parent=1 // pred_check_branch
      %79 = sbr.rel (0) target = $region33
    $region32: #{tpu_custom_call.1} parent=1 // pred_region
      _
    $region33: #{tpu_custom_call.1} parent=1 // pred_fallthru
      _
    // Predicated region
    $region34: #{tpu_custom_call.1} parent=1 // pred_check
      _
    $region35: #{tpu_custom_call.1} parent=1 // pred_check_branch
      %81 = sbr.rel (0) target = $region37
    $region36: #{tpu_custom_call.1} parent=1 // pred_region
      %83 = vsyncadd [#allocation9], 0
      %s84 = sshll.u32 %s8, 4
      %s85 = int_to_ptr.hbm [resolvable:$true] %s84
      %s86 = sshll.u32 [#allocation10], 4
      %s87 = int_to_ptr.vmem [resolvable:$true] %s86
      %92 = dma.hbm_to_vmem [thread:$0]  %s85, 1024, %s87, [#allocation9], 128, 128, 8
    $region37: #{tpu_custom_call.1} parent=1 // pred_fallthru
      _
    // Predicated region
    $region38: #{tpu_custom_call.1} parent=1 // pred_check
      _
    $region39: #{tpu_custom_call.1} parent=1 // pred_check_branch
      %94 = sbr.rel (0) target = $region41
    $region40: #{tpu_custom_call.1} parent=1 // pred_region
      _
    $region41: #{tpu_custom_call.1} parent=1 // pred_fallthru
      _
    // Predicated region
    $region42: #{tpu_custom_call.1} parent=1 // pred_check
      _
    $region43: #{tpu_custom_call.1} parent=1 // pred_check_branch
      %96 = sbr.rel (0) target = $region45
    $region44: #{tpu_custom_call.1} parent=1 // pred_region
      %98 = vsyncadd [#allocation12], 0
      %s99 = sshll.u32 %s10, 4
      %s100 = int_to_ptr.hbm [resolvable:$true] %s99
      %s101 = sshll.u32 [#allocation11], 4
      %s102 = int_to_ptr.vmem [resolvable:$true] %s101
      %107 = dma.hbm_to_vmem [thread:$0]  %s100, 1024, %s102, [#allocation12], 128, 128, 8
    $region45: #{tpu_custom_call.1} parent=1 // pred_fallthru
      _
    // Predicated region
    $region46: #{tpu_custom_call.1} parent=1 // pred_check
      _
    $region47: #{tpu_custom_call.1} parent=1 // pred_check_branch
      %109 = sbr.rel (0) target = $region49
    $region48: #{tpu_custom_call.1} parent=1 // pred_region
      _
    $region49: #{tpu_custom_call.1} parent=1 // pred_fallthru
      _
    // Predicated region
    $region50: #{tpu_custom_call.1} parent=1 // pred_check
      _
    $region51: #{tpu_custom_call.1} parent=1 // pred_check_branch
      %111 = sbr.rel (0) target = $region53
    $region52: #{tpu_custom_call.1} parent=1 // pred_region
      %113 = dma.done [#allocation3], 128
    $region53: #{tpu_custom_call.1} parent=1 // pred_fallthru
      _
    // Predicated region
    $region54: #{tpu_custom_call.1} parent=1 // pred_check
      _
    $region55: #{tpu_custom_call.1} parent=1 // pred_check_branch
      %115 = sbr.rel (0) target = $region57
    $region56: #{tpu_custom_call.1} parent=1 // pred_region
      %117 = dma.done [#allocation6], 32
    $region57: #{tpu_custom_call.1} parent=1 // pred_fallthru
      _
    // Predicated region
    $region58: #{tpu_custom_call.1} parent=1 // pred_check
      _
    $region59: #{tpu_custom_call.1} parent=1 // pred_check_branch
      %119 = sbr.rel (0) target = $region61
    $region60: #{tpu_custom_call.1} parent=1 // pred_region
      %121 = dma.done [#allocation6], 1024
    $region61: #{tpu_custom_call.1} parent=1 // pred_fallthru
      _
    // Predicated region
    $region62: #{tpu_custom_call.1} parent=1 // pred_check
      _
    $region63: #{tpu_custom_call.1} parent=1 // pred_check_branch
      %123 = sbr.rel (0) target = $region65
    $region64: #{tpu_custom_call.1} parent=1 // pred_region
      %125 = dma.done [#allocation9], 1024
    $region65: #{tpu_custom_call.1} parent=1 // pred_fallthru
      _
    // Predicated region
    $region66: #{tpu_custom_call.1} parent=1 // pred_check
      _
    $region67: #{tpu_custom_call.1} parent=1 // pred_check_branch
      %127 = sbr.rel (0) target = $region69
    $region68: #{tpu_custom_call.1} parent=1 // pred_region
      %129 = dma.done [#allocation9], 1024
    $region69: #{tpu_custom_call.1} parent=1 // pred_fallthru
      _
    // Predicated region
    $region70: #{tpu_custom_call.1} parent=1 // pred_check
      _
    $region71: #{tpu_custom_call.1} parent=1 // pred_check_branch
      %131 = sbr.rel (0) target = $region73
    $region72: #{tpu_custom_call.1} parent=1 // pred_region
      %133 = dma.done [#allocation12], 1024
    $region73: #{tpu_custom_call.1} parent=1 // pred_fallthru
      _
    %v134 = vld [vmem:[#allocation2] sm:$0xf]
    %v135 = vld [vmem:[#allocation2 + $0x4] sm:$0xf]
    %v136 = vld [vmem:[#allocation5] sm:$0x3]
    %v137 = vld [vmem:[#allocation7] sm:$0xff]
    %v138 = vld [vmem:[#allocation7 + $0x8] sm:$0xff]
    %v139 = vld [vmem:[#allocation7 + $0x10] sm:$0xff]
    %v140 = vld [vmem:[#allocation7 + $0x18] sm:$0xff]
    %v141 = vld [vmem:[#allocation7 + $0x20] sm:$0xff]
    %v142 = vld [vmem:[#allocation7 + $0x28] sm:$0xff]
    %v143 = vld [vmem:[#allocation7 + $0x30] sm:$0xff]
    %v144 = vld [vmem:[#allocation7 + $0x38] sm:$0xff]
    %v145 = vld [vmem:[%s3] sm:$0x1]
    %v147 = vperm.slane %v145, 0
    %vm149 = vcmask 523264
    %v151 = vsel %vm149, %v136, 0
    %153 = vmatpush.msra.mxu0 0.0
    %154 = vmatpush.msra.mxu0 0.0
    %155 = vmatpush.msra.mxu0 0.0
    %156 = vmatpush.msra.mxu0 0.0
    %157 = vmatpush.msra.mxu0 0.0
    %158 = vmatpush.msra.mxu0 0.0
    %159 = vmatpush.msra.mxu0 0.0
    %160 = vmatpush.msra.mxu0 0.0
    %161 = vmatpush.msra.mxu0 %v144
    %162 = vmatpush.msra.mxu0 %v143
    %163 = vmatpush.msra.mxu0 %v142
    %164 = vmatpush.msra.mxu0 %v141
    %165 = vmatpush.msra.mxu0 %v140
    %166 = vmatpush.msra.mxu0 %v139
    %167 = vmatpush.msra.mxu0 %v138
    %168 = vmatpush.msra.mxu0 %v137
    %169 = vmatmul.f32.gmra.mxu0 %v151
    %v170 = vpop.f32.mrf.mxu0
    %v171 = vadd.f32 %v147, %v170
    %172 = vdwg.mxu0
    %v173 = vld [vmem:[#allocation8] sm:$0xff]
    %v174 = vld [vmem:[#allocation8 + $0x8] sm:$0xff]
    %v175 = vld [vmem:[#allocation8 + $0x10] sm:$0xff]
    %v176 = vld [vmem:[#allocation8 + $0x18] sm:$0xff]
    %v177 = vld [vmem:[#allocation8 + $0x20] sm:$0xff]
    %v178 = vld [vmem:[#allocation8 + $0x28] sm:$0xff]
    %v179 = vld [vmem:[#allocation8 + $0x30] sm:$0xff]
    %v180 = vld [vmem:[#allocation8 + $0x38] sm:$0xff]
    %v181 = vld [vmem:[%s5] sm:$0x1]
    %v183 = vperm.slane %v181, 0
    %v186 = vsel %vm149, %v171, 0
    %188 = vmatpush.msra.mxu0 0.0
    %189 = vmatpush.msra.mxu0 0.0
    %190 = vmatpush.msra.mxu0 0.0
    %191 = vmatpush.msra.mxu0 0.0
    %192 = vmatpush.msra.mxu0 0.0
    %193 = vmatpush.msra.mxu0 0.0
    %194 = vmatpush.msra.mxu0 0.0
    %195 = vmatpush.msra.mxu0 0.0
    %196 = vmatpush.msra.mxu0 %v180
    %197 = vmatpush.msra.mxu0 %v179
    %198 = vmatpush.msra.mxu0 %v178
    %199 = vmatpush.msra.mxu0 %v177
    %200 = vmatpush.msra.mxu0 %v176
    %201 = vmatpush.msra.mxu0 %v175
    %202 = vmatpush.msra.mxu0 %v174
    %203 = vmatpush.msra.mxu0 %v173
    %204 = vmatmul.f32.gmra.mxu0 %v186
    %v205 = vpop.f32.mrf.mxu0
    %v206 = vadd.f32 %v183, %v205
    %207 = vdwg.mxu0
    %v209 = vrot.slane %v206, 1
    %v210 = vperm.slane %v206, 0
    %v211 = vperm.slane %v209, 0
    %v214 = vadd.f32 %v134, %v210
    %v215 = vadd.f32 %v135, %v211
    %vm216 = vcmask 519168
    %v217 = vsel %vm216, %v214, 0.0
    %218 = vadd.xlane.f32.xlu0 %v217
    %v219 = vpop.xlane.xlu0 %218
    %v220 = vsel %vm216, %v215, 0.0
    %221 = vadd.xlane.f32.xlu0 %v220
    %v222 = vpop.xlane.xlu0 %221
    %v223 = vrcp.pop 64.0
    %v224 = vmul.f32 64.0, %v223
    %v225 = vsub.f32 1.0, %v224
    %v226 = vmul.f32 %v223, %v225
    %v227 = vadd.f32 %v223, %v226
    %vm228 = vweird.f32 %v223
    %v229 = vsel %vm228, %v223, %v227
    %v230 = vmul.f32 %v219, %v229
    %v231 = vmul.f32 %v222, %v229
    %v232 = vsub.f32 %v214, %v230
    %v233 = vsub.f32 %v215, %v231
    %v234 = vmul.f32 %v232, %v232
    %v235 = vmul.f32 %v233, %v233
    %v236 = vsel %vm216, %v234, 0.0
    %237 = vadd.xlane.f32.xlu0 %v236
    %v238 = vpop.xlane.xlu0 %237
    %v239 = vsel %vm216, %v235, 0.0
    %240 = vadd.xlane.f32.xlu0 %v239
    %v241 = vpop.xlane.xlu0 %240
    %v242 = vmul.f32 %v238, %v229
    %v243 = vmul.f32 %v241, %v229
    %v244 = vadd.f32 %v242, 1e-05
    %v245 = vadd.f32 %v243, 1e-05
    %v246 = vrsqrt.pop %v244
    %v247 = vmul.f32 %v246, %v244
    %v248 = vmul.f32 %v247, %v246
    %v249 = vmul.f32 0.5, %v248
    %v250 = vsub.f32 1.5, %v249
    %v251 = vmul.f32 %v246, %v250
    %vm252 = vweird.f32 %v244
    %vm253 = vweird.f32 %v246
    %vm254 = vmor %vm252, %vm253
    %v255 = vsel %vm254, %v246, %v251
    %v256 = vrsqrt.pop %v245
    %v257 = vmul.f32 %v256, %v245
    %v258 = vmul.f32 %v257, %v256
    %v259 = vmul.f32 0.5, %v258
    %v260 = vsub.f32 1.5, %v259
    %v261 = vmul.f32 %v256, %v260
    %vm262 = vweird.f32 %v245
    %vm263 = vweird.f32 %v256
    %vm264 = vmor %vm262, %vm263
    %v265 = vsel %vm264, %v256, %v261
    %v266 = vmul.f32 %v232, %v255
    %v267 = vmul.f32 %v233, %v265
    %v268 = vld [vmem:[%s6] sm:$0x1]
    %v270 = vperm.slane %v268, 0
    %v272 = vmul.f32 %v266, %v270
    %v273 = vmul.f32 %v267, %v270
    %v274 = vld [vmem:[%s7] sm:$0x1]
    %v276 = vperm.slane %v274, 0
    %v278 = vadd.f32 %v272, %v276
    %v279 = vadd.f32 %v273, %v276
    %v280 = vld [vmem:[#allocation10] sm:$0xff]
    %v281 = vld [vmem:[#allocation10 + $0x8] sm:$0xff]
    %v282 = vld [vmem:[#allocation10 + $0x10] sm:$0xff]
    %v283 = vld [vmem:[#allocation10 + $0x18] sm:$0xff]
    %v284 = vld [vmem:[#allocation10 + $0x20] sm:$0xff]
    %v285 = vld [vmem:[#allocation10 + $0x28] sm:$0xff]
    %v286 = vld [vmem:[#allocation10 + $0x30] sm:$0xff]
    %v287 = vld [vmem:[#allocation10 + $0x38] sm:$0xff]
    %v288 = vld [vmem:[%s9] sm:$0x1]
    %v290 = vperm.slane %v288, 0
    %294 = vst [vmem:[#allocation1] ss:$2 sm:$0xff] %v278
    %s295 = scalar_lea.vmem [#allocation1], 1
    %296 = vst [vmem:[%s295] ss:$2 sm:$0xff] %v279
    %v297 = vld.sshfl [vmem:[#allocation1] sm:$0xff pattern:$0x75316420]
    %v298 = vsel %vm149, %v297, 0
    %300 = vmatpush.msra.mxu0 0.0
    %301 = vmatpush.msra.mxu0 0.0
    %302 = vmatpush.msra.mxu0 0.0
    %303 = vmatpush.msra.mxu0 0.0
    %304 = vmatpush.msra.mxu0 0.0
    %305 = vmatpush.msra.mxu0 0.0
    %306 = vmatpush.msra.mxu0 0.0
    %307 = vmatpush.msra.mxu0 0.0
    %308 = vmatpush.msra.mxu0 %v287
    %309 = vmatpush.msra.mxu0 %v286
    %310 = vmatpush.msra.mxu0 %v285
    %311 = vmatpush.msra.mxu0 %v284
    %312 = vmatpush.msra.mxu0 %v283
    %313 = vmatpush.msra.mxu0 %v282
    %314 = vmatpush.msra.mxu0 %v281
    %315 = vmatpush.msra.mxu0 %v280
    %316 = vmatmul.f32.gmra.mxu0 %v298
    %v317 = vpop.f32.mrf.mxu0
    %v318 = vadd.f32 %v290, %v317
    %319 = vdwg.mxu0
    %v320 = vmax.f32 %v318, 0.0
    %v321 = vld [vmem:[#allocation11] sm:$0xff]
    %v322 = vld [vmem:[#allocation11 + $0x8] sm:$0xff]
    %v323 = vld [vmem:[#allocation11 + $0x10] sm:$0xff]
    %v324 = vld [vmem:[#allocation11 + $0x18] sm:$0xff]
    %v325 = vld [vmem:[#allocation11 + $0x20] sm:$0xff]
    %v326 = vld [vmem:[#allocation11 + $0x28] sm:$0xff]
    %v327 = vld [vmem:[#allocation11 + $0x30] sm:$0xff]
    %v328 = vld [vmem:[#allocation11 + $0x38] sm:$0xff]
    %v329 = vld [vmem:[%s11] sm:$0x1]
    %v331 = vperm.slane %v329, 0
    %v334 = vsel %vm149, %v320, 0
    %336 = vmatpush.msra.mxu0 0.0
    %337 = vmatpush.msra.mxu0 0.0
    %338 = vmatpush.msra.mxu0 0.0
    %339 = vmatpush.msra.mxu0 0.0
    %340 = vmatpush.msra.mxu0 0.0
    %341 = vmatpush.msra.mxu0 0.0
    %342 = vmatpush.msra.mxu0 0.0
    %343 = vmatpush.msra.mxu0 0.0
    %344 = vmatpush.msra.mxu0 %v328
    %345 = vmatpush.msra.mxu0 %v327
    %346 = vmatpush.msra.mxu0 %v326
    %347 = vmatpush.msra.mxu0 %v325
    %348 = vmatpush.msra.mxu0 %v324
    %349 = vmatpush.msra.mxu0 %v323
    %350 = vmatpush.msra.mxu0 %v322
    %351 = vmatpush.msra.mxu0 %v321
    %352 = vmatmul.f32.gmra.mxu0 %v334
    %v353 = vpop.f32.mrf.mxu0
    %v354 = vadd.f32 %v331, %v353
    %355 = vdwg.mxu0
    %356 = vst [vmem:[#allocation13] sm:$0xff] %v354
    // Predicated region
    $region74: #{tpu_custom_call.1} parent=1 // pred_check
      _
    $region75: #{tpu_custom_call.1} parent=1 // pred_check_branch
      %358 = sbr.rel (0) target = $region77
    $region76: #{tpu_custom_call.1} parent=1 // pred_region
      %360 = vsyncadd [#allocation4], 0
      %s362 = sshll.u32 [#allocation13], 4
      %s363 = int_to_ptr.vmem [resolvable:$true] %s362
      %s364 = sshll.u32 %s12, 4
      %s365 = int_to_ptr.hbm [resolvable:$true] %s364
      %367 = dma.vmem_to_hbm [thread:$0]  %s363, 128, %s365, [#allocation4]
    $region77: #{tpu_custom_call.1} parent=1 // pred_fallthru
      _
    // Predicated region
    $region78: #{tpu_custom_call.1} parent=1 // pred_check
      _
    $region79: #{tpu_custom_call.1} parent=1 // pred_check_branch
      %369 = sbr.rel (0) target = $region81
    $region80: #{tpu_custom_call.1} parent=1 // pred_region
      %371 = dma.done [#allocation4], 128
    $region81: #{tpu_custom_call.1} parent=1 // pred_fallthru
      _
    %372 = vsyncpa [#allocation3], 1
    %373 = vsyncpa [#allocation6], 1
    %374 = vsyncpa [#allocation9], 1
    %375 = vsyncpa [#allocation12], 1
    %376 = vsyncpa [#allocation4], 1

</llo_original>
